<compile_context>
chip_gen: v5e
topology: v5e:2x2
jax: 0.10.0
libtpu: 0.0.40
codegen_flags: <defaults>
</compile_context>

<pallas_src>
import functools

import numpy as np
import jax
import jax.numpy as jnp
from jax.experimental import pallas as pl
from jax.experimental.pallas import tpu as pltpu


# ----------------------------------------------------------------------------- helpers
def _round_up(v, m):
    return (v + m - 1) // m * m


def _m_tiling(m, max_tm=512):
    mp = _round_up(m, 16)                     # bf16 sublane packing
    if mp <= max_tm:
        return mp, mp
    return max_tm, _round_up(m, max_tm)


def _k_tiling(k, max_tk=1024):
    kp = _round_up(k, 16)
    if kp <= max_tk:
        return kp, kp                         # single K step
    kp = _round_up(k, 256)                    # pad so a 256-multiple tile divides (MXU friendly)
    for tk in (2048, 1024, 512, 256):
        if tk <= max_tk and kp % tk == 0:
            return tk, kp
    return 256, kp                            # kp is a 256 multiple, always divides


def _n_tiling(n, max_tn=512):
    npad = _round_up(n, 128)                  # lane-dense output (no vst.msk)
    for tn in (512, 384, 256, 128):
        if tn <= max_tn and npad % tn == 0:
            return tn, npad
    return 128, npad


def _vmem_limit_bytes(tm, tk, tn, nbuf, in_bytes=2, out_bytes=2):
    need = (tm * tk + tk * tn) * in_bytes * nbuf      # x / W^T tiles, nbuf-deep
    need += 8 * tn * 4 * 2                            # bias row (sublane padded), 2 bufs
    need += tm * tn * out_bytes * 2                   # double-buffered output tile
    need += tm * tn * 4                               # f32 accumulator scratch
    return int(min(max(2 * need, 32 << 20), 48 << 20))


# ----------------------------------------------------------------------------- kernel
def _qkv_gemm_kernel(x_ref, wt_ref, bias_ref, o_ref, acc_ref):
    k = pl.program_id(2)                      # K (reduction) axis, innermost

    @pl.when(k == 0)
    def _init():
        acc_ref[...] = jnp.zeros_like(acc_ref)

    # (tm, tk) @ (tk, tn) on the MXU, f32 accumulation.
    acc_ref[...] += jnp.dot(x_ref[...], wt_ref[...],
                            preferred_element_type=jnp.float32)

    @pl.when(k == pl.num_programs(2) - 1)
    def _finalize():
        o_ref[...] = (acc_ref[...] + bias_ref[...]).astype(o_ref.dtype)


# ----------------------------------------------------------------------------- packing (hoisted)
def pack_lora_qkv_params(w_base, bias, lora_A, lora_B, scale,
                         compute_dtype=jnp.bfloat16, max_tk=1024, max_tn=512):
    """Pack the (static-between-updates) parameters ONCE.

    w_base : (3*out, in) torch Linear layout,  bias : (3*out,)
    lora_A : [A_k, A_v] each (rank, in);  lora_B : [B_k, B_v] each (out, rank)
    The LoRA delta is merged into the effective weight here (rank-r product,
    cheap), so the kernel is a plain GEMM.  kv_only semantics: the adapters map
    onto the LAST len(lora_A) row-blocks of the QKV weight.
    """
    n_total, in_features = w_base.shape
    out_features = lora_B[0].shape[0]
    n_adapt = len(lora_A)
    rank = lora_A[0].shape[0]

    # W_eff = W_base + cat([zeros, scale*B_k@A_k, scale*B_v@A_v], dim=0), in f32.
    w_eff = w_base.astype(jnp.float32)
    row0 = n_total - n_adapt * out_features
    for i, (A, B) in enumerate(zip(lora_A, lora_B)):
        delta = scale * (B.astype(jnp.float32) @ A.astype(jnp.float32))
        lo = row0 + i * out_features
        w_eff = w_eff.at[lo:lo + out_features, :].add(delta)

    tk, kp = _k_tiling(in_features, max_tk)
    tn, npad = _n_tiling(n_total, max_tn)

    # W_eff^T zero-padded to (kp, npad), compute dtype.
    wt = jnp.zeros((kp, npad), compute_dtype)
    wt = wt.at[:in_features, :n_total].set(w_eff.T.astype(compute_dtype))

    bias_p = jnp.zeros((1, npad), jnp.float32)
    bias_p = bias_p.at[0, :n_total].set(bias.astype(jnp.float32))

    meta = dict(in_features=in_features, n_total=n_total, out_features=out_features,
                rank=rank, kp=kp, tk=tk, npad=npad, tn=tn,
                compute_dtype=compute_dtype, out_dtype=compute_dtype)
    return (wt, bias_p), meta


# ----------------------------------------------------------------------------- forward
def lora_qkv_forward(x, packed, meta, *, max_tm=512, buffer_count=2, out_dtype=None):
    wt, bias_p = packed
    in_features = meta["in_features"]
    kp, tk = meta["kp"], meta["tk"]
    npad, tn = meta["npad"], meta["tn"]
    n_total = meta["n_total"]
    cdt = meta["compute_dtype"]
    odt = meta["out_dtype"] if out_dtype is None else out_dtype

    assert x.shape[-1] == in_features
    lead = x.shape[:-1]
    m = int(np.prod(lead)) if lead else 1
    tm, mp = _m_tiling(m, max_tm)

    # Fast path: avoid the pad copy when shapes already match the tiling.
    x2 = x.reshape(m, in_features)
    if x2.dtype != cdt:
        x2 = x2.astype(cdt)
    if (m != mp) or (in_features != kp):
        x2 = jnp.zeros((mp, kp), cdt).at[:m, :in_features].set(x2)

    # N outermost -> megacore (v7x) shards disjoint weight column panels.
    grid = (npad // tn, mp // tm, kp // tk)

    def _spec(block, idx):
        if buffer_count != 2:                 # sweepable deeper pipelining
            return pl.BlockSpec(block, idx, pipeline_mode=pl.Buffered(buffer_count))
        return pl.BlockSpec(block, idx)

    out = pl.pallas_call(
        _qkv_gemm_kernel,
        out_shape=jax.ShapeDtypeStruct((mp, npad), odt),
        grid_spec=pltpu.PrefetchScalarGridSpec(
            num_scalar_prefetch=0,
            grid=grid,
            in_specs=[
                _spec((tm, tk), lambda j, i, k: (i, k)),      # x rows
                _spec((tk, tn), lambda j, i, k: (k, j)),      # W_eff^T tile
                pl.BlockSpec((1, tn), lambda j, i, k: (0, j)),  # bias (re-fetched only per N tile)
            ],
            out_specs=pl.BlockSpec((tm, tn), lambda j, i, k: (i, j)),
            scratch_shapes=[pltpu.VMEM((tm, tn), jnp.float32)],   # f32 accumulator
        ),
        compiler_params=pltpu.CompilerParams(
            dimension_semantics=("parallel", "parallel", "arbitrary"),
            vmem_limit_bytes=_vmem_limit_bytes(tm, tk, tn, max(buffer_count, 2)),
        ),
    )(x2, wt, bias_p)

    # Fast path: skip the output slice when nothing was padded.
    if m == mp and n_total == npad:
        return out.reshape(*lead, n_total)
    return out[:m, :n_total].reshape(*lead, n_total)


def lora_qkv_linear(x, w_base, bias, lora_A, lora_B, scale):
    """Convenience one-shot API (packing NOT hoisted — prefer pack + forward)."""
    packed, meta = pack_lora_qkv_params(w_base, bias, lora_A, lora_B, scale)
    return lora_qkv_forward(x, packed, meta)


# ----------------------------------------------------------------------------- reference
def reference(x, w_base, bias, lora_A, lora_B, scale):
    """Pure-JAX f32 mirror of the torch forward (merged-weight form)."""
    f32 = jnp.float32
    delta = jnp.concatenate(
        [scale * (B.astype(f32) @ A.astype(f32)) for A, B in zip(lora_A, lora_B)],
        axis=0)
    zeros = jnp.zeros((w_base.shape[0] - delta.shape[0], w_base.shape[1]), f32)
    w_eff = w_base.astype(f32) + jnp.concatenate([zeros, delta], axis=0)
    y = jnp.einsum("...k,nk->...n", x.astype(f32), w_eff,
                   precision=jax.lax.Precision.HIGHEST)
    return y + bias.astype(f32)


if __name__ == "__main__":
    key = jax.random.PRNGKey(0)
    batch, seq = 2, 8
    in_features = 32
    out_features = 32          # per Q/K/V head group; base QKV weight has 3*out rows
    rank = 4
    scale = 0.5

    ks = jax.random.split(key, 7)
    x = jax.random.normal(ks[0], (batch, seq, in_features), jnp.float32)
    w_base = jax.random.normal(ks[1], (3 * out_features, in_features), jnp.float32) * 0.05
    bias = jax.random.normal(ks[2], (3 * out_features,), jnp.float32) * 0.1
    # NOTE: the torch module initializes lora_B to zeros (LoRA delta starts at 0).
    # Small random values are used so the LoRA path is exercised numerically.
    lora_A = [jax.random.normal(ks[3 + i], (rank, in_features), jnp.float32) * 0.1
              for i in range(2)]
    lora_B = [jax.random.normal(ks[5 + i], (out_features, rank), jnp.float32) * 0.1
              for i in range(2)]

    # Quantize activations/params to the kernel compute dtype (bf16) once; the
    # f32 reference is evaluated on the same quantized values.
    to_bf16 = lambda a: a.astype(jnp.bfloat16)
    x_q = to_bf16(x)
    w_q = to_bf16(w_base)
    lA_q = [to_bf16(a) for a in lora_A]
    lB_q = [to_bf16(b) for b in lora_B]

    # Pack once (hoisted out of the per-call path; weights static between updates).
    packed, meta = pack_lora_qkv_params(w_q, bias, lA_q, lB_q, scale)

    y = lora_qkv_forward(x_q, packed, meta)
    y = jax.block_until_ready(y)

    y_ref = reference(x_q, w_q, bias, lA_q, lB_q, scale)
    assert y.shape == (batch, seq, 3 * out_features)
    np.testing.assert_allclose(np.asarray(y.astype(jnp.float32)),
                               np.asarray(y_ref), rtol=2e-2, atol=2e-2)
    print("KERNEL_OK")
</pallas_src>

<mosaic_0001>
module attributes {stable_mosaic.version = 11 : i64} {
  func.func @_qkv_gemm_kernel(%arg0: i32, %arg1: i32, %arg2: i32, %arg3: memref<16x32xbf16, #tpu.memory_space<vmem>>, %arg4: memref<32x128xbf16, #tpu.memory_space<vmem>>, %arg5: memref<1x128xf32, #tpu.memory_space<vmem>>, %arg6: memref<16x128xbf16, #tpu.memory_space<vmem>>, %arg7: memref<16x128xf32, #tpu.memory_space<vmem>>) attributes {dimension_semantics = [#tpu.dimension_semantics<parallel>, #tpu.dimension_semantics<parallel>, #tpu.dimension_semantics<arbitrary>], iteration_bounds = array<i64: 1, 1, 1>, scalar_prefetch = 0 : i64, scratch_operands = 1 : i64, tpu.core_type = #tpu.core_type<tc>, window_params = [{transform_indices = @transform_0, window_bounds = array<i64: 16, 32>}, {transform_indices = @transform_1, window_bounds = array<i64: 32, 128>}, {transform_indices = @transform_2, window_bounds = array<i64: 1, 128>}, {transform_indices = @transform_3, window_bounds = array<i64: 16, 128>}]} {
    %c0_i32 = arith.constant 0 : i32
    %0 = arith.cmpi eq, %arg2, %c0_i32 : i32
    %1 = arith.extui %0 : i1 to i32
    %c0_i32_0 = arith.constant 0 : i32
    %2 = arith.cmpi ne, %1, %c0_i32_0 : i32
    scf.if %2 {
      %cst_10 = arith.constant 0.000000e+00 : f32
      %12 = vector.broadcast %cst_10 : f32 to vector<16x128xf32>
      %c0_11 = arith.constant 0 : index
      %c0_12 = arith.constant 0 : index
      %13 = vector.load %arg7[%c0_11, %c0_12] : memref<16x128xf32, #tpu.memory_space<vmem>>, vector<16x128xf32>
      tpu.vector_store %arg7[%c0_11, %c0_12], %12 {strides = array<i32>} : memref<16x128xf32, #tpu.memory_space<vmem>>, vector<16x128xf32>,
    } else {
    }
    %c0 = arith.constant 0 : index
    %c0_1 = arith.constant 0 : index
    %3 = vector.load %arg7[%c0, %c0_1] : memref<16x128xf32, #tpu.memory_space<vmem>>, vector<16x128xf32>
    %c0_2 = arith.constant 0 : index
    %c0_3 = arith.constant 0 : index
    %4 = vector.load %arg3[%c0_2, %c0_3] : memref<16x32xbf16, #tpu.memory_space<vmem>>, vector<16x32xbf16>
    %c0_4 = arith.constant 0 : index
    %c0_5 = arith.constant 0 : index
    %5 = vector.load %arg4[%c0_4, %c0_5] : memref<32x128xbf16, #tpu.memory_space<vmem>>, vector<32x128xbf16>
    %cst = arith.constant dense<0.000000e+00> : vector<16x128xf32>
    %6 = tpu.matmul %4, %5, %cst {dimension_numbers = #tpu.dot_dimension_numbers<[1], [0], [0], [1], [0, 0, 1, 1], [], []>} : vector<16x32xbf16>, vector<32x128xbf16>, vector<16x128xf32> -> vector<16x128xf32>
    %7 = arith.addf %3, %6 : vector<16x128xf32>
    %c0_6 = arith.constant 0 : index
    %c0_7 = arith.constant 0 : index
    %8 = vector.load %arg7[%c0_6, %c0_7] : memref<16x128xf32, #tpu.memory_space<vmem>>, vector<16x128xf32>
    tpu.vector_store %arg7[%c0_6, %c0_7], %7 {strides = array<i32>} : memref<16x128xf32, #tpu.memory_space<vmem>>, vector<16x128xf32>,
    %c0_i32_8 = arith.constant 0 : i32
    %9 = arith.cmpi eq, %arg2, %c0_i32_8 : i32
    %10 = arith.extui %9 : i1 to i32
    %c0_i32_9 = arith.constant 0 : i32
    %11 = arith.cmpi ne, %10, %c0_i32_9 : i32
    scf.if %11 {
      %c0_10 = arith.constant 0 : index
      %c0_11 = arith.constant 0 : index
      %12 = vector.load %arg7[%c0_10, %c0_11] : memref<16x128xf32, #tpu.memory_space<vmem>>, vector<16x128xf32>
      %c0_12 = arith.constant 0 : index
      %c0_13 = arith.constant 0 : index
      %13 = vector.load %arg5[%c0_12, %c0_13] : memref<1x128xf32, #tpu.memory_space<vmem>>, vector<1x128xf32>
      %14 = vector.broadcast %13 : vector<1x128xf32> to vector<16x128xf32>
      %15 = arith.addf %12, %14 : vector<16x128xf32>
      %16 = arith.truncf %15 : vector<16x128xf32> to vector<16x128xbf16>
      %c0_14 = arith.constant 0 : index
      %c0_15 = arith.constant 0 : index
      %17 = vector.load %arg6[%c0_14, %c0_15] : memref<16x128xbf16, #tpu.memory_space<vmem>>, vector<16x128xbf16>
      tpu.vector_store %arg6[%c0_14, %c0_15], %16 {strides = array<i32>} : memref<16x128xbf16, #tpu.memory_space<vmem>>, vector<16x128xbf16>,
    } else {
    }
    return
  }
  func.func @transform_0(%arg0: i32, %arg1: i32, %arg2: i32) -> (i32, i32) {
    %c0_i32 = arith.constant 0 : i32
    return %arg1, %arg2 : i32, i32
  }
  func.func @transform_1(%arg0: i32, %arg1: i32, %arg2: i32) -> (i32, i32) {
    %c0_i32 = arith.constant 0 : i32
    return %arg2, %arg0 : i32, i32
  }
  func.func @transform_2(%arg0: i32, %arg1: i32, %arg2: i32) -> (i32, i32) {
    %c0_i32 = arith.constant 0 : i32
    %c0_i32_0 = arith.constant 0 : i32
    return %c0_i32, %arg0 : i32, i32
  }
  func.func @transform_3(%arg0: i32, %arg1: i32, %arg2: i32) -> (i32, i32) {
    %c0_i32 = arith.constant 0 : i32
    return %arg1, %arg0 : i32, i32
  }
}

</mosaic_0001>

<llo_original>
// kernel: tpu_custom_call.1
$region0: #{tpu_custom_call.1}
  #allocation0 [shape = 'u32[]', space=smem, size = 0x4, offset = 0x4, fixed_abs, tag = 'smem constant byte address 0x4 - core index']
  #allocation1 [shape = 'u32[72,128]{1,0:T(1,128)}', space=vmem, size = 0x9000, scoped, tag = 'internal scratch']
  #allocation2 [shape = 'f32[16,128]{1,0:T(8,128)}', space=vmem, size = 0x2000, scoped, tag = 'scratch operand']
  %s0 = inlined_call_operand.hbm [shape: bf16[16,32], index: 0, kind: input, shape index: {}]
  %s1 = inlined_call_operand.hbm [shape: bf16[32,128], index: 1, kind: input, shape index: {}]
  %s2 = inlined_call_operand.vmem [shape: f32[1,128], index: 2, kind: input, shape index: {}]
  %s3 = inlined_call_operand.hbm [shape: bf16[16,128], index: 3, kind: output, shape index: {}]
  %s4 = sld [smem:[#allocation0]]
  $region38: #{tpu_custom_call.1} parent=0
    _
  %s6 = ssub.s32 1, %s4
  %s7 = scalar_select 0, %s6, %s4
  $region1: #{tpu_custom_call.1} parent=0
    #allocation3 [shape = 'u8[4096]{0}', space=vmem, size = 0x1000, scoped, tag = 'input window, operand 0, single buffered']
    #allocation4 [shape = 's32[1]{0}', space=sflag, size = 0x4, scoped, tag = 'scoped memory for tpu_custom_call.1']
    #allocation5 [shape = 's32[1]{0}', space=sflag, size = 0x4, scoped, tag = 'scoped memory for tpu_custom_call.1']
    #allocation6 [shape = 'u8[8192]{0}', space=vmem, size = 0x2000, scoped, tag = 'input window, operand 1, single buffered']
    #allocation7 [shape = 's32[1]{0}', space=sflag, size = 0x4, scoped, tag = 'scoped memory for tpu_custom_call.1']
    #allocation8 [shape = 'u8[4096]{0}', space=vmem, size = 0x1000, scoped, tag = 'output window, operand 0, single buffered']
    %8 = vsyncpa [#allocation4], 0
    %9 = vsyncpa [#allocation7], 0
    %10 = vsyncpa [#allocation5], 0
    // Predicated region
    $region2: #{tpu_custom_call.1} parent=1 // pred_check
      _
    $region3: #{tpu_custom_call.1} parent=1 // pred_check_branch
      %12 = sbr.rel (0) target = $region5
    $region4: #{tpu_custom_call.1} parent=1 // pred_region
      %14 = vsyncadd [#allocation4], 0
      %s15 = sshll.u32 %s0, 4
      %s16 = int_to_ptr.hbm [resolvable:$true] %s15
      %s17 = sshll.u32 [#allocation3], 4
      %s18 = int_to_ptr.vmem [resolvable:$true] %s17
      %23 = dma.hbm_to_vmem [thread:$0]  %s16, 128, %s18, [#allocation4], 64, 64, 4
    $region5: #{tpu_custom_call.1} parent=1 // pred_fallthru
      _
    // Predicated region
    $region6: #{tpu_custom_call.1} parent=1 // pred_check
      _
    $region7: #{tpu_custom_call.1} parent=1 // pred_check_branch
      %25 = sbr.rel (0) target = $region9
    $region8: #{tpu_custom_call.1} parent=1 // pred_region
      %27 = vsyncadd [#allocation7], 0
      %s28 = sshll.u32 %s1, 4
      %s29 = int_to_ptr.hbm [resolvable:$true] %s28
      %s30 = sshll.u32 [#allocation6], 4
      %s31 = int_to_ptr.vmem [resolvable:$true] %s30
      %36 = dma.hbm_to_vmem [thread:$0]  %s29, 256, %s31, [#allocation7], 64, 64, 4
    $region9: #{tpu_custom_call.1} parent=1 // pred_fallthru
      _
    // Predicated region
    $region10: #{tpu_custom_call.1} parent=1 // pred_check
      _
    $region11: #{tpu_custom_call.1} parent=1 // pred_check_branch
      %38 = sbr.rel (0) target = $region13
    $region12: #{tpu_custom_call.1} parent=1 // pred_region
      _
    $region13: #{tpu_custom_call.1} parent=1 // pred_fallthru
      _
    // Predicated region
    $region14: #{tpu_custom_call.1} parent=1 // pred_check
      _
    $region15: #{tpu_custom_call.1} parent=1 // pred_check_branch
      %40 = sbr.rel (0) target = $region17
    $region16: #{tpu_custom_call.1} parent=1 // pred_region
      %42 = dma.done [#allocation4], 128
    $region17: #{tpu_custom_call.1} parent=1 // pred_fallthru
      _
    // Predicated region
    $region18: #{tpu_custom_call.1} parent=1 // pred_check
      _
    $region19: #{tpu_custom_call.1} parent=1 // pred_check_branch
      %44 = sbr.rel (0) target = $region21
    $region20: #{tpu_custom_call.1} parent=1 // pred_region
      %46 = dma.done [#allocation7], 256
    $region21: #{tpu_custom_call.1} parent=1 // pred_fallthru
      _
    %p48 = scmp.eq.s32.totalorder 0, 0
    // Predicated region
    $region22: #{tpu_custom_call.1} parent=1 // pred_check
      %p49 = pneg %p48
    $region23: #{tpu_custom_call.1} parent=1 // pred_check_branch
      %51 = sbr.rel (%p49) target = $region25
    $region24: #{tpu_custom_call.1} parent=1 // pred_region
      %52 = vst [vmem:[#allocation2] sm:$0xff] 0.0
      %53 = vst [vmem:[#allocation2 + $0x8] sm:$0xff] 0.0
    $region25: #{tpu_custom_call.1} parent=1 // pred_fallthru
      _
    %v54 = vld [vmem:[#allocation2] sm:$0xff]
    %v55 = vld [vmem:[#allocation2 + $0x8] sm:$0xff]
    %v56 = vld [vmem:[#allocation3] sm:$0xf]
    %v57 = vld [vmem:[#allocation3 + $0x4] sm:$0xf]
    %v58 = vld [vmem:[#allocation6] sm:$0xf]
    %v59 = vld [vmem:[#allocation6 + $0x4] sm:$0xf]
    %v60 = vld [vmem:[#allocation6 + $0x8] sm:$0xf]
    %v61 = vld [vmem:[#allocation6 + $0xc] sm:$0xf]
    %v64 = vunpack.c.l.b16 %v56
    %v65 = vunpack.c.l.b16 %v57
    %v66 = vpack.c.b16 %v65, %v64
    %v71 = vunpack.c.l.b16 %v58
    %v72 = vunpack.c.l.b16 %v59
    %v73 = vunpack.c.l.b16 %v60
    %v74 = vunpack.c.l.b16 %v61
    %v75 = vpack.c.b16 %v72, %v71
    %v76 = vpack.c.b16 %v74, %v73
    %vm79 = vcmask 261120
    %v81 = vsel %vm79, %v66, 0
    %83 = vmatpush.bf16.msra.mxu0 0
    %84 = vmatpush.bf16.msra.mxu0 0
    %85 = vmatpush.bf16.msra.mxu0 0
    %86 = vmatpush.bf16.msra.mxu0 0
    %87 = vmatpush.bf16.msra.mxu0 0
    %88 = vmatpush.bf16.msra.mxu0 0
    %89 = vmatpush.bf16.msra.mxu0 %v76
    %90 = vmatpush.bf16.msra.mxu0 %v75
    %91 = vmatmul.bf16.gmra.mxu0 %v81
    %v92 = vpop.f32.mrf.mxu0
    %v93 = vadd.f32 0.0, %v92
    %v94 = vpop.f32.mrf.mxu0
    %v95 = vadd.f32 0.0, %v94
    %96 = vdwg.mxu0
    %v97 = vadd.f32 %v54, %v93
    %v98 = vadd.f32 %v55, %v95
    %99 = vst [vmem:[#allocation2] sm:$0xff] %v97
    %100 = vst [vmem:[#allocation2 + $0x8] sm:$0xff] %v98
    // Predicated region
    $region26: #{tpu_custom_call.1} parent=1 // pred_check
      %p101 = pneg %p48
    $region27: #{tpu_custom_call.1} parent=1 // pred_check_branch
      %103 = sbr.rel (%p101) target = $region29
    $region28: #{tpu_custom_call.1} parent=1 // pred_region
      %v104 = vld [vmem:[#allocation2] sm:$0xff]
      %v105 = vld [vmem:[#allocation2 + $0x8] sm:$0xff]
      %v106 = vld [vmem:[%s2] sm:$0x1]
      %v108 = vperm.slane %v106, 0
      %v110 = vadd.f32 %v104, %v108
      %v111 = vadd.f32 %v105, %v108
      %v112 = vpack.c.bf16 %v110, %v110
      %v113 = vpack.c.bf16 %v111, %v111
      %114 = vst [vmem:[#allocation8] sm:$0xf] %v112
      %115 = vst [vmem:[#allocation8 + $0x4] sm:$0xf] %v113
    $region29: #{tpu_custom_call.1} parent=1 // pred_fallthru
      _
    // Predicated region
    $region30: #{tpu_custom_call.1} parent=1 // pred_check
      _
    $region31: #{tpu_custom_call.1} parent=1 // pred_check_branch
      %117 = sbr.rel (0) target = $region33
    $region32: #{tpu_custom_call.1} parent=1 // pred_region
      %119 = vsyncadd [#allocation5], 0
      %s120 = sshll.u32 [#allocation8], 4
      %s121 = int_to_ptr.vmem [resolvable:$true] %s120
      %s122 = sshll.u32 %s3, 4
      %s123 = int_to_ptr.hbm [resolvable:$true] %s122
      %128 = dma.vmem_to_hbm [thread:$0]  %s121, 128, %s123, [#allocation5], 64, 64, 4
    $region33: #{tpu_custom_call.1} parent=1 // pred_fallthru
      _
    // Predicated region
    $region34: #{tpu_custom_call.1} parent=1 // pred_check
      _
    $region35: #{tpu_custom_call.1} parent=1 // pred_check_branch
      %130 = sbr.rel (0) target = $region37
    $region36: #{tpu_custom_call.1} parent=1 // pred_region
      %132 = dma.done [#allocation5], 128
    $region37: #{tpu_custom_call.1} parent=1 // pred_fallthru
      _
    %133 = vsyncpa [#allocation4], 1
    %134 = vsyncpa [#allocation7], 1
    %135 = vsyncpa [#allocation5], 1

</llo_original>
